<compile_context>
chip_gen: v5e
topology: v5e:2x2
jax: 0.10.0
libtpu: 0.0.40
codegen_flags: <defaults>
</compile_context>

<pallas_src>
import functools

import jax
import jax.numpy as jnp
from jax import lax
from jax.experimental import pallas as pl
from jax.experimental.pallas import tpu as pltpu


# Contract the last dim of both operands: A @ B.T without any transpose.
_NT_DIMS = (((1,), (1,)), ((), ()))


def _round_up(x, m):
    return ((x + m - 1) // m) * m


def _pick_row_tile(n, t_max):
    """Largest tile in {t_max, t_max//2} that still yields >=2 blocks (so the
    'parallel' axis can shard across TensorCores); otherwise one 8-aligned block."""
    for t in (t_max, t_max // 2):
        if t >= 128 and n >= 2 * t:
            return t
    return max(8, min(t_max, _round_up(n, 8)))


def _decoder_resident_kernel(num_d, num_c, r_ref, in_all_ref, ed_ref, ec_ref, o_ref):
    # r_ref      : (TM, F)       tile of inputs[:num_d]            (streamed)
    # in_all_ref : (n_nodes, F)  full `inputs`, VMEM-resident (DMA'd once)
    # ed_ref     : (TM, F)       tile of embd_drug                 (streamed)
    # ec_ref     : (num_c, F)    full embd_cir, VMEM-resident
    # o_ref      : (TM, num_c)
    # num_d / num_c are Python ints -> static slice of the resident block.
    d = in_all_ref[pl.ds(num_d, num_c), :]
    x = lax.dot_general(r_ref[...], d, _NT_DIMS, preferred_element_type=jnp.float32)
    x = x + lax.dot_general(ed_ref[...], ec_ref[...], _NT_DIMS,
                            preferred_element_type=jnp.float32)
    o_ref[...] = jax.nn.sigmoid(x).astype(o_ref.dtype)


def _decoder_tiled_kernel(r_ref, d_ref, ed_ref, ec_ref, o_ref):
    # r_ref/ed_ref: (TM, F), d_ref/ec_ref: (TN, F), o_ref: (TM, TN)
    x = lax.dot_general(r_ref[...], d_ref[...], _NT_DIMS,
                        preferred_element_type=jnp.float32)
    x = x + lax.dot_general(ed_ref[...], ec_ref[...], _NT_DIMS,
                            preferred_element_type=jnp.float32)
    o_ref[...] = jax.nn.sigmoid(x).astype(o_ref.dtype)


def inner_product_decoder(inputs, embd_cir, embd_drug, num_d, *,
                          tm=512, tn=512,
                          operand_dtype=jnp.float32,
                          vmem_budget_bytes=44 * 1024 * 1024):
    """Pallas implementation of InnerProductDecoder.forward (eval / p=0 dropout)."""
    inputs = inputs.astype(operand_dtype)
    embd_cir = embd_cir.astype(operand_dtype)
    embd_drug = embd_drug.astype(operand_dtype)

    n_nodes, feat = inputs.shape
    num_c = n_nodes - num_d
    assert embd_drug.shape == (num_d, feat)
    assert embd_cir.shape == (num_c, feat)

    opb = jnp.dtype(operand_dtype).itemsize
    tm_eff = _pick_row_tile(num_d, tm)
    grid_m = pl.cdiv(num_d, tm_eff)

    # Advisory cost for XLA scheduling around the custom call.
    cost = pl.CostEstimate(
        flops=4 * num_d * num_c * feat,                       # two NT matmuls
        transcendentals=num_d * num_c,                        # sigmoid -> exp
        bytes_accessed=(n_nodes + 2 * num_d + 2 * num_c) * feat * opb
                       + num_d * num_c * 4,
    )

    # VMEM footprint of the D-resident path (every BlockSpec operand is
    # double-buffered by the pipeline, even the grid-constant resident ones).
    resident_bytes = (
        2 * tm_eff * feat * opb          # R tiles
        + 2 * tm_eff * feat * opb        # embd_drug tiles
        + 2 * n_nodes * feat * opb       # inputs, resident (read once from HBM)
        + 2 * num_c * feat * opb         # embd_cir, resident
        + 2 * tm_eff * num_c * 4         # output tiles (f32)
        + num_c * feat * 4               # headroom for the in-kernel bottom-row slice
    )

    if resident_bytes <= vmem_budget_bytes:
        # --- Primary path: D side fully VMEM-resident, 1-D grid over drug tiles.
        vmem_limit = int(min(max(resident_bytes + (8 << 20), 32 << 20), 48 << 20))
        out2d = pl.pallas_call(
            functools.partial(_decoder_resident_kernel, num_d, num_c),
            out_shape=jax.ShapeDtypeStruct((num_d, num_c), jnp.float32),
            grid=(grid_m,),
            in_specs=[
                # inputs, row-tiled (top / drug rows); edge blocks past num_d
                # produce output rows that fall outside out_shape -> discarded.
                pl.BlockSpec((tm_eff, feat), lambda i: (i, 0)),
                # inputs again, as one full-array resident block (index_map is
                # constant across the grid -> DMA'd exactly once).
                pl.BlockSpec((n_nodes, feat), lambda i: (0, 0)),
                pl.BlockSpec((tm_eff, feat), lambda i: (i, 0)),   # embd_drug tiles
                pl.BlockSpec((num_c, feat), lambda i: (0, 0)),    # embd_cir resident
            ],
            out_specs=pl.BlockSpec((tm_eff, num_c), lambda i: (i, 0)),
            compiler_params=pltpu.CompilerParams(
                dimension_semantics=("parallel",),
                vmem_limit_bytes=vmem_limit),
            cost_estimate=cost,
        )(inputs, inputs, embd_drug, embd_cir)
    else:
        # --- Fallback for very large problems: 2-D tiled grid, both axes parallel.
        tn_eff = tn if num_c >= tn else num_c
        grid_n = pl.cdiv(num_c, tn_eff)
        # Only on this (huge-shape) path do we materialize the bottom slice; its
        # extra num_c x F HBM pass is negligible vs. the num_d x num_c output.
        d_bot = inputs[num_d:, :]
        tiled_bytes = (2 * (2 * tm_eff + 2 * tn_eff) * feat * opb
                       + 2 * tm_eff * tn_eff * 4)
        vmem_limit = int(min(max(2 * tiled_bytes, 32 << 20), 48 << 20))
        out2d = pl.pallas_call(
            _decoder_tiled_kernel,
            out_shape=jax.ShapeDtypeStruct((num_d, num_c), jnp.float32),
            grid=(grid_m, grid_n),
            in_specs=[
                pl.BlockSpec((tm_eff, feat), lambda i, j: (i, 0)),   # inputs (top rows)
                pl.BlockSpec((tn_eff, feat), lambda i, j: (j, 0)),   # d_bot
                pl.BlockSpec((tm_eff, feat), lambda i, j: (i, 0)),   # embd_drug
                pl.BlockSpec((tn_eff, feat), lambda i, j: (j, 0)),   # embd_cir
            ],
            out_specs=pl.BlockSpec((tm_eff, tn_eff), lambda i, j: (i, j)),
            compiler_params=pltpu.CompilerParams(
                dimension_semantics=("parallel", "parallel"),
                vmem_limit_bytes=vmem_limit),
            cost_estimate=cost,
        )(inputs, d_bot, embd_drug, embd_cir)

    return out2d.reshape(-1)                # torch.reshape(x, [-1])


def _reference(inputs, embd_cir, embd_drug, num_d):
    """Pure-JAX reference of the same forward semantics (highest precision)."""
    R = jnp.concatenate([inputs[:num_d], embd_drug], axis=1)
    D = jnp.concatenate([inputs[num_d:], embd_cir], axis=1)
    x = lax.dot_general(R, D, _NT_DIMS,
                        precision=lax.Precision.HIGHEST,
                        preferred_element_type=jnp.float32)
    return jax.nn.sigmoid(x).reshape(-1)


if __name__ == "__main__":
    key = jax.random.PRNGKey(0)
    ks = jax.random.split(key, 9)

    def run_case(kin, kcir, kdrug, num_d, num_c, feat, **kw):
        n_nodes = num_d + num_c
        inputs = jax.random.normal(kin, (n_nodes, feat), dtype=jnp.float32)
        embd_cir = jax.random.normal(kcir, (num_c, feat), dtype=jnp.float32)
        embd_drug = jax.random.normal(kdrug, (num_d, feat), dtype=jnp.float32)
        out = jax.block_until_ready(
            inner_product_decoder(inputs, embd_cir, embd_drug, num_d, **kw))
        ref = _reference(inputs, embd_cir, embd_drug, num_d)
        assert out.shape == (num_d * num_c,)
        err = float(jnp.max(jnp.abs(out - ref)))
        assert jnp.allclose(out, ref, atol=2e-5, rtol=2e-5), err
        return out

    # 1) Small single-block resident path (module-like toy shape).
    run_case(ks[0], ks[1], ks[2], num_d=16, num_c=128, feat=128)

    # 2) Multi-block resident path (grid_m > 1, partial edge tile, megacore-shardable).
    run_case(ks[3], ks[4], ks[5], num_d=1000, num_c=256, feat=128)

    # 3) Force the 2-D tiled fallback path (tiny VMEM budget) to cover it too.
    run_case(ks[6], ks[7], ks[8], num_d=256, num_c=384, feat=128,
             vmem_budget_bytes=0)

    print("KERNEL_OK")
</pallas_src>

<mosaic_0001>
module attributes {stable_mosaic.version = 11 : i64} {
  func.func @_decoder_resident_kernel(%arg0: i32, %arg1: memref<16x128xf32, #tpu.memory_space<vmem>>, %arg2: memref<144x128xf32, #tpu.memory_space<vmem>>, %arg3: memref<16x128xf32, #tpu.memory_space<vmem>>, %arg4: memref<128x128xf32, #tpu.memory_space<vmem>>, %arg5: memref<16x128xf32, #tpu.memory_space<vmem>>) attributes {dimension_semantics = [#tpu.dimension_semantics<parallel>], iteration_bounds = array<i64: 1>, scalar_prefetch = 0 : i64, scratch_operands = 0 : i64, tpu.core_type = #tpu.core_type<tc>, window_params = [{transform_indices = @transform_0, window_bounds = array<i64: 16, 128>}, {pipeline_mode = #tpu.pipeline_mode<synchronous>, transform_indices = @transform_1, window_bounds = array<i64: 144, 128>}, {transform_indices = @transform_2, window_bounds = array<i64: 16, 128>}, {pipeline_mode = #tpu.pipeline_mode<synchronous>, transform_indices = @transform_3, window_bounds = array<i64: 128, 128>}, {transform_indices = @transform_4, window_bounds = array<i64: 16, 128>}]} {
    %c16 = arith.constant 16 : index
    %c0 = arith.constant 0 : index
    %0 = vector.load %arg2[%c16, %c0] : memref<144x128xf32, #tpu.memory_space<vmem>>, vector<128x128xf32>
    %c0_0 = arith.constant 0 : index
    %c0_1 = arith.constant 0 : index
    %1 = vector.load %arg1[%c0_0, %c0_1] : memref<16x128xf32, #tpu.memory_space<vmem>>, vector<16x128xf32>
    %cst = arith.constant dense<0.000000e+00> : vector<16x128xf32>
    %2 = tpu.matmul %1, %0, %cst {dimension_numbers = #tpu.dot_dimension_numbers<[1], [1], [0], [0], [0, 0, 1, 0], [], []>} : vector<16x128xf32>, vector<128x128xf32>, vector<16x128xf32> -> vector<16x128xf32>
    %c0_2 = arith.constant 0 : index
    %c0_3 = arith.constant 0 : index
    %3 = vector.load %arg3[%c0_2, %c0_3] : memref<16x128xf32, #tpu.memory_space<vmem>>, vector<16x128xf32>
    %c0_4 = arith.constant 0 : index
    %c0_5 = arith.constant 0 : index
    %4 = vector.load %arg4[%c0_4, %c0_5] : memref<128x128xf32, #tpu.memory_space<vmem>>, vector<128x128xf32>
    %cst_6 = arith.constant dense<0.000000e+00> : vector<16x128xf32>
    %5 = tpu.matmul %3, %4, %cst_6 {dimension_numbers = #tpu.dot_dimension_numbers<[1], [1], [0], [0], [0, 0, 1, 0], [], []>} : vector<16x128xf32>, vector<128x128xf32>, vector<16x128xf32> -> vector<16x128xf32>
    %6 = arith.addf %2, %5 : vector<16x128xf32>
    %7 = arith.negf %6 : vector<16x128xf32>
    %8 = math.exp %7 : vector<16x128xf32>
    %cst_7 = arith.constant 1.000000e+00 : f32
    %9 = vector.broadcast %cst_7 : f32 to vector<16x128xf32>
    %10 = arith.addf %9, %8 : vector<16x128xf32>
    %11 = arith.divf %9, %10 : vector<16x128xf32>
    %c0_8 = arith.constant 0 : index
    %c0_9 = arith.constant 0 : index
    %12 = vector.load %arg5[%c0_8, %c0_9] : memref<16x128xf32, #tpu.memory_space<vmem>>, vector<16x128xf32>
    tpu.vector_store %arg5[%c0_8, %c0_9], %11 {strides = array<i32>} : memref<16x128xf32, #tpu.memory_space<vmem>>, vector<16x128xf32>,
    return
  }
  func.func @transform_0(%arg0: i32) -> (i32, i32) {
    %c0_i32 = arith.constant 0 : i32
    %c0_i32_0 = arith.constant 0 : i32
    return %arg0, %c0_i32 : i32, i32
  }
  func.func @transform_1(%arg0: i32) -> (i32, i32) {
    %c0_i32 = arith.constant 0 : i32
    %c0_i32_0 = arith.constant 0 : i32
    %c0_i32_1 = arith.constant 0 : i32
    return %c0_i32, %c0_i32_0 : i32, i32
  }
  func.func @transform_2(%arg0: i32) -> (i32, i32) {
    %c0_i32 = arith.constant 0 : i32
    %c0_i32_0 = arith.constant 0 : i32
    return %arg0, %c0_i32 : i32, i32
  }
  func.func @transform_3(%arg0: i32) -> (i32, i32) {
    %c0_i32 = arith.constant 0 : i32
    %c0_i32_0 = arith.constant 0 : i32
    %c0_i32_1 = arith.constant 0 : i32
    return %c0_i32, %c0_i32_0 : i32, i32
  }
  func.func @transform_4(%arg0: i32) -> (i32, i32) {
    %c0_i32 = arith.constant 0 : i32
    %c0_i32_0 = arith.constant 0 : i32
    return %arg0, %c0_i32 : i32, i32
  }
}

</mosaic_0001>

<llo_original>
// kernel: tpu_custom_call.1
$region0: #{tpu_custom_call.1}
  #allocation0 [shape = 'u32[]', space=smem, size = 0x4, offset = 0x4, fixed_abs, tag = 'smem constant byte address 0x4 - core index']
  #allocation1 [shape = 'u32[72,128]{1,0:T(1,128)}', space=vmem, size = 0x9000, scoped, tag = 'internal scratch']
  %s0 = inlined_call_operand.hbm [shape: f32[144,128], index: 0, kind: input, shape index: {}]
  %s1 = inlined_call_operand.hbm [shape: f32[144,128], index: 1, kind: input, shape index: {}]
  %s2 = inlined_call_operand.hbm [shape: f32[16,128], index: 2, kind: input, shape index: {}]
  %s3 = inlined_call_operand.hbm [shape: f32[128,128], index: 3, kind: input, shape index: {}]
  %s4 = inlined_call_operand.hbm [shape: f32[16,128], index: 4, kind: output, shape index: {}]
  %s5 = sld [smem:[#allocation0]]
  $region42: #{tpu_custom_call.1} parent=0
    _
  %s7 = ssub.s32 1, %s5
  %s8 = scalar_select 0, %s7, %s5
  $region1: #{tpu_custom_call.1} parent=0
    #allocation2 [shape = 'u8[8192]{0}', space=vmem, size = 0x2000, scoped, tag = 'input window, operand 0, single buffered']
    #allocation3 [shape = 's32[1]{0}', space=sflag, size = 0x4, scoped, tag = 'scoped memory for tpu_custom_call.1']
    #allocation4 [shape = 's32[1]{0}', space=sflag, size = 0x4, scoped, tag = 'scoped memory for tpu_custom_call.1']
    #allocation5 [shape = 'u8[73728]{0}', space=vmem, size = 0x12000, scoped, tag = 'input window, operand 1, single buffered']
    #allocation6 [shape = 's32[1]{0}', space=sflag, size = 0x4, scoped, tag = 'scoped memory for tpu_custom_call.1']
    #allocation7 [shape = 'u8[8192]{0}', space=vmem, size = 0x2000, scoped, tag = 'input window, operand 2, single buffered']
    #allocation8 [shape = 'u8[65536]{0}', space=vmem, size = 0x10000, scoped, tag = 'input window, operand 3, single buffered']
    #allocation9 [shape = 's32[1]{0}', space=sflag, size = 0x4, scoped, tag = 'scoped memory for tpu_custom_call.1']
    #allocation10 [shape = 'u8[8192]{0}', space=vmem, size = 0x2000, scoped, tag = 'output window, operand 0, single buffered']
    %9 = vsyncpa [#allocation3], 0
    %10 = vsyncpa [#allocation6], 0
    %11 = vsyncpa [#allocation9], 0
    %12 = vsyncpa [#allocation4], 0
    // Predicated region
    $region2: #{tpu_custom_call.1} parent=1 // pred_check
      _
    $region3: #{tpu_custom_call.1} parent=1 // pred_check_branch
      %14 = sbr.rel (0) target = $region5
    $region4: #{tpu_custom_call.1} parent=1 // pred_region
      %16 = vsyncadd [#allocation3], 0
      %s17 = sshll.u32 %s0, 4
      %s18 = int_to_ptr.hbm [resolvable:$true] %s17
      %s19 = sshll.u32 [#allocation2], 4
      %s20 = int_to_ptr.vmem [resolvable:$true] %s19
      %25 = dma.hbm_to_vmem [thread:$0]  %s18, 256, %s20, [#allocation3], 128, 128, 8
    $region5: #{tpu_custom_call.1} parent=1 // pred_fallthru
      _
    // Predicated region
    $region6: #{tpu_custom_call.1} parent=1 // pred_check
      _
    $region7: #{tpu_custom_call.1} parent=1 // pred_check_branch
      %27 = sbr.rel (0) target = $region9
    $region8: #{tpu_custom_call.1} parent=1 // pred_region
      %29 = vsyncadd [#allocation6], 0
      %s30 = sshll.u32 %s1, 4
      %s31 = int_to_ptr.hbm [resolvable:$true] %s30
      %s32 = sshll.u32 [#allocation5], 4
      %s33 = int_to_ptr.vmem [resolvable:$true] %s32
      %38 = dma.hbm_to_vmem [thread:$0]  %s31, 2304, %s33, [#allocation6], 128, 128, 8
    $region9: #{tpu_custom_call.1} parent=1 // pred_fallthru
      _
    // Predicated region
    $region10: #{tpu_custom_call.1} parent=1 // pred_check
      _
    $region11: #{tpu_custom_call.1} parent=1 // pred_check_branch
      %40 = sbr.rel (0) target = $region13
    $region12: #{tpu_custom_call.1} parent=1 // pred_region
      %42 = vsyncadd [#allocation6], 0
      %s43 = sshll.u32 %s2, 4
      %s44 = int_to_ptr.hbm [resolvable:$true] %s43
      %s45 = sshll.u32 [#allocation7], 4
      %s46 = int_to_ptr.vmem [resolvable:$true] %s45
      %51 = dma.hbm_to_vmem [thread:$0]  %s44, 256, %s46, [#allocation6], 128, 128, 8
    $region13: #{tpu_custom_call.1} parent=1 // pred_fallthru
      _
    // Predicated region
    $region14: #{tpu_custom_call.1} parent=1 // pred_check
      _
    $region15: #{tpu_custom_call.1} parent=1 // pred_check_branch
      %53 = sbr.rel (0) target = $region17
    $region16: #{tpu_custom_call.1} parent=1 // pred_region
      %55 = vsyncadd [#allocation9], 0
      %s56 = sshll.u32 %s3, 4
      %s57 = int_to_ptr.hbm [resolvable:$true] %s56
      %s58 = sshll.u32 [#allocation8], 4
      %s59 = int_to_ptr.vmem [resolvable:$true] %s58
      %64 = dma.hbm_to_vmem [thread:$0]  %s57, 2048, %s59, [#allocation9], 128, 128, 8
    $region17: #{tpu_custom_call.1} parent=1 // pred_fallthru
      _
    // Predicated region
    $region18: #{tpu_custom_call.1} parent=1 // pred_check
      _
    $region19: #{tpu_custom_call.1} parent=1 // pred_check_branch
      %66 = sbr.rel (0) target = $region21
    $region20: #{tpu_custom_call.1} parent=1 // pred_region
      %68 = dma.done [#allocation3], 256
    $region21: #{tpu_custom_call.1} parent=1 // pred_fallthru
      _
    // Predicated region
    $region22: #{tpu_custom_call.1} parent=1 // pred_check
      _
    $region23: #{tpu_custom_call.1} parent=1 // pred_check_branch
      %70 = sbr.rel (0) target = $region25
    $region24: #{tpu_custom_call.1} parent=1 // pred_region
      %72 = dma.done [#allocation6], 2304
    $region25: #{tpu_custom_call.1} parent=1 // pred_fallthru
      _
    // Predicated region
    $region26: #{tpu_custom_call.1} parent=1 // pred_check
      _
    $region27: #{tpu_custom_call.1} parent=1 // pred_check_branch
      %74 = sbr.rel (0) target = $region29
    $region28: #{tpu_custom_call.1} parent=1 // pred_region
      %76 = dma.done [#allocation6], 256
    $region29: #{tpu_custom_call.1} parent=1 // pred_fallthru
      _
    // Predicated region
    $region30: #{tpu_custom_call.1} parent=1 // pred_check
      _
    $region31: #{tpu_custom_call.1} parent=1 // pred_check_branch
      %78 = sbr.rel (0) target = $region33
    $region32: #{tpu_custom_call.1} parent=1 // pred_region
      %80 = dma.done [#allocation9], 2048
    $region33: #{tpu_custom_call.1} parent=1 // pred_fallthru
      _
    %v81 = vld [vmem:[#allocation5 + $0x10] sm:$0xff]
    %v82 = vld [vmem:[#allocation5 + $0x18] sm:$0xff]
    %v83 = vld [vmem:[#allocation5 + $0x20] sm:$0xff]
    %v84 = vld [vmem:[#allocation5 + $0x28] sm:$0xff]
    %v85 = vld [vmem:[#allocation5 + $0x30] sm:$0xff]
    %v86 = vld [vmem:[#allocation5 + $0x38] sm:$0xff]
    %v87 = vld [vmem:[#allocation5 + $0x40] sm:$0xff]
    %v88 = vld [vmem:[#allocation5 + $0x48] sm:$0xff]
    %v89 = vld [vmem:[#allocation5 + $0x50] sm:$0xff]
    %v90 = vld [vmem:[#allocation5 + $0x58] sm:$0xff]
    %v91 = vld [vmem:[#allocation5 + $0x60] sm:$0xff]
    %v92 = vld [vmem:[#allocation5 + $0x68] sm:$0xff]
    %v93 = vld [vmem:[#allocation5 + $0x70] sm:$0xff]
    %v94 = vld [vmem:[#allocation5 + $0x78] sm:$0xff]
    %v95 = vld [vmem:[#allocation5 + $0x80] sm:$0xff]
    %v96 = vld [vmem:[#allocation5 + $0x88] sm:$0xff]
    %v97 = vld [vmem:[#allocation2] sm:$0xff]
    %v98 = vld [vmem:[#allocation2 + $0x8] sm:$0xff]
    %v99 = vld [vmem:[#allocation7] sm:$0xff]
    %v100 = vld [vmem:[#allocation7 + $0x8] sm:$0xff]
    %v101 = vld [vmem:[#allocation8] sm:$0xff]
    %v102 = vld [vmem:[#allocation8 + $0x8] sm:$0xff]
    %v103 = vld [vmem:[#allocation8 + $0x10] sm:$0xff]
    %v104 = vld [vmem:[#allocation8 + $0x18] sm:$0xff]
    %v105 = vld [vmem:[#allocation8 + $0x20] sm:$0xff]
    %v106 = vld [vmem:[#allocation8 + $0x28] sm:$0xff]
    %v107 = vld [vmem:[#allocation8 + $0x30] sm:$0xff]
    %v108 = vld [vmem:[#allocation8 + $0x38] sm:$0xff]
    %v109 = vld [vmem:[#allocation8 + $0x40] sm:$0xff]
    %v110 = vld [vmem:[#allocation8 + $0x48] sm:$0xff]
    %v111 = vld [vmem:[#allocation8 + $0x50] sm:$0xff]
    %v112 = vld [vmem:[#allocation8 + $0x58] sm:$0xff]
    %v113 = vld [vmem:[#allocation8 + $0x60] sm:$0xff]
    %v114 = vld [vmem:[#allocation8 + $0x68] sm:$0xff]
    %v115 = vld [vmem:[#allocation8 + $0x70] sm:$0xff]
    %v116 = vld [vmem:[#allocation8 + $0x78] sm:$0xff]
    %117 = vmatpush.xpose.msra.mxu0 %v116
    %118 = vmatpush.xpose.msra.mxu0 %v115
    %119 = vmatpush.xpose.msra.mxu0 %v114
    %120 = vmatpush.xpose.msra.mxu0 %v113
    %121 = vmatpush.xpose.msra.mxu0 %v112
    %122 = vmatpush.xpose.msra.mxu0 %v111
    %123 = vmatpush.xpose.msra.mxu0 %v110
    %124 = vmatpush.xpose.msra.mxu0 %v109
    %125 = vmatpush.xpose.msra.mxu0 %v108
    %126 = vmatpush.xpose.msra.mxu0 %v107
    %127 = vmatpush.xpose.msra.mxu0 %v106
    %128 = vmatpush.xpose.msra.mxu0 %v105
    %129 = vmatpush.xpose.msra.mxu0 %v104
    %130 = vmatpush.xpose.msra.mxu0 %v103
    %131 = vmatpush.xpose.msra.mxu0 %v102
    %132 = vmatpush.xpose.msra.mxu0 %v101
    %133 = vmatmul.f32.gmra.mxu0 %v99
    %v134 = vpop.f32.mrf.mxu0
    %v135 = vadd.f32 0.0, %v134
    %136 = vmatmul.f32.gmra.mxu0 %v100
    %v137 = vpop.f32.mrf.mxu0
    %v138 = vadd.f32 0.0, %v137
    %139 = vdwg.mxu0
    %140 = vmatpush.xpose.msra.mxu0 %v96
    %141 = vmatpush.xpose.msra.mxu0 %v95
    %142 = vmatpush.xpose.msra.mxu0 %v94
    %143 = vmatpush.xpose.msra.mxu0 %v93
    %144 = vmatpush.xpose.msra.mxu0 %v92
    %145 = vmatpush.xpose.msra.mxu0 %v91
    %146 = vmatpush.xpose.msra.mxu0 %v90
    %147 = vmatpush.xpose.msra.mxu0 %v89
    %148 = vmatpush.xpose.msra.mxu0 %v88
    %149 = vmatpush.xpose.msra.mxu0 %v87
    %150 = vmatpush.xpose.msra.mxu0 %v86
    %151 = vmatpush.xpose.msra.mxu0 %v85
    %152 = vmatpush.xpose.msra.mxu0 %v84
    %153 = vmatpush.xpose.msra.mxu0 %v83
    %154 = vmatpush.xpose.msra.mxu0 %v82
    %155 = vmatpush.xpose.msra.mxu0 %v81
    %156 = vmatmul.f32.gmra.mxu0 %v97
    %v157 = vpop.f32.mrf.mxu0
    %v158 = vadd.f32 %v135, %v157
    %159 = vmatmul.f32.gmra.mxu0 %v98
    %v160 = vpop.f32.mrf.mxu0
    %v161 = vadd.f32 %v138, %v160
    %162 = vdwg.mxu0
    %v163 = vxor.u32 %v158, 2147483648
    %v164 = vxor.u32 %v161, 2147483648
    %v165 = vmul.f32 %v163, 1.442695
    %v166 = vpow.pop %v165
    %v167 = vmul.f32 %v164, 1.442695
    %v168 = vpow.pop %v167
    %v169 = vadd.f32 %v166, 1.0
    %v170 = vadd.f32 %v168, 1.0
    %v171 = vrcp.pop %v169
    %v172 = vmul.f32 %v169, %v171
    %v173 = vsub.f32 1.0, %v172
    %v174 = vmul.f32 %v171, %v173
    %v175 = vadd.f32 %v171, %v174
    %vm176 = vweird.f32 %v169
    %vm177 = vweird.f32 %v171
    %vm178 = vmor %vm176, %vm177
    %v179 = vsel %vm178, %v171, %v175
    %v180 = vand.u32 2147483647, %v169
    %vm181 = vcmp.eq.f32.partialorder %v180, 8.507059e+37
    %v182 = vand.u32 %v169, 2147483648
    %v183 = vor.u32 1.1754944e-38, %v182
    %v184 = vsel %vm181, %v183, %v179
    %v185 = vmul.f32 1.0, %v184
    %v186 = vrcp.pop %v170
    %v187 = vmul.f32 %v170, %v186
    %v188 = vsub.f32 1.0, %v187
    %v189 = vmul.f32 %v186, %v188
    %v190 = vadd.f32 %v186, %v189
    %vm191 = vweird.f32 %v170
    %vm192 = vweird.f32 %v186
    %vm193 = vmor %vm191, %vm192
    %v194 = vsel %vm193, %v186, %v190
    %v195 = vand.u32 2147483647, %v170
    %vm196 = vcmp.eq.f32.partialorder %v195, 8.507059e+37
    %v197 = vand.u32 %v170, 2147483648
    %v198 = vor.u32 1.1754944e-38, %v197
    %v199 = vsel %vm196, %v198, %v194
    %v200 = vmul.f32 1.0, %v199
    %201 = vst [vmem:[#allocation10] sm:$0xff] %v185
    %202 = vst [vmem:[#allocation10 + $0x8] sm:$0xff] %v200
    // Predicated region
    $region34: #{tpu_custom_call.1} parent=1 // pred_check
      _
    $region35: #{tpu_custom_call.1} parent=1 // pred_check_branch
      %204 = sbr.rel (0) target = $region37
    $region36: #{tpu_custom_call.1} parent=1 // pred_region
      %206 = vsyncadd [#allocation4], 0
      %s207 = sshll.u32 [#allocation10], 4
      %s208 = int_to_ptr.vmem [resolvable:$true] %s207
      %s209 = sshll.u32 %s4, 4
      %s210 = int_to_ptr.hbm [resolvable:$true] %s209
      %215 = dma.vmem_to_hbm [thread:$0]  %s208, 256, %s210, [#allocation4], 128, 128, 8
    $region37: #{tpu_custom_call.1} parent=1 // pred_fallthru
      _
    // Predicated region
    $region38: #{tpu_custom_call.1} parent=1 // pred_check
      _
    $region39: #{tpu_custom_call.1} parent=1 // pred_check_branch
      %217 = sbr.rel (0) target = $region41
    $region40: #{tpu_custom_call.1} parent=1 // pred_region
      %219 = dma.done [#allocation4], 256
    $region41: #{tpu_custom_call.1} parent=1 // pred_fallthru
      _
    %220 = vsyncpa [#allocation3], 1
    %221 = vsyncpa [#allocation6], 1
    %222 = vsyncpa [#allocation9], 1
    %223 = vsyncpa [#allocation4], 1

</llo_original>
